<compile_context>
chip_gen: v7x
topology: tpu7x:2x2x1
jax: 0.10.0
libtpu: 0.0.40
codegen_flags: <defaults>
</compile_context>

<pallas_src>
import functools

import jax
import jax.numpy as jnp
from jax import lax
from jax.experimental import pallas as pl
from jax.experimental.pallas import tpu as pltpu

_MIB = 1024 * 1024


def _round_up(v, m):
    return ((v + m - 1) // m) * m


def _vmem_limit_bytes():
    """Generation-aware VMEM budget: ~48 MiB on 64 MiB (v7x) parts, ~110 MiB on
    128 MiB (v5e/v6e) parts."""
    cap = 64 * _MIB
    try:
        info = pltpu.get_tpu_info()
        cap = int(getattr(info, "vmem_capacity_bytes", cap) or cap)
    except Exception:
        pass
    return max(32 * _MIB, min(cap - 16 * _MIB, 110 * _MIB))


# --------------------------------------------------------------------------- #
# Kernel A: project K and V once per batch element.
#   K is stored per-head transposed (hd, M_pad) so kernel B's score matmul has
#   a lane-dense (TN, M_pad) output; V stays lane-dense (M_pad, D).
# --------------------------------------------------------------------------- #
def _kv_proj_kernel(s_ref, wk_ref, bk_ref, wv_ref, bv_ref, k_ref, v_ref, *,
                    num_heads):
    s = s_ref[0]                                            # (M_pad, D) bf16
    D = s.shape[-1]
    hd = D // num_heads
    k_full = jnp.dot(s, wk_ref[...], preferred_element_type=jnp.float32) + bk_ref[...]
    v_full = jnp.dot(s, wv_ref[...], preferred_element_type=jnp.float32) + bv_ref[...]
    v_ref[0] = v_full.astype(v_ref.dtype)
    # One small per-head transpose, amortized over all query tiles in kernel B.
    for h in range(num_heads):
        sl = slice(h * hd, (h + 1) * hd)
        k_ref[0, h] = k_full[:, sl].astype(k_ref.dtype).T   # (hd, M_pad)


# --------------------------------------------------------------------------- #
# Kernel B: per (batch, query-tile) attention + merge (+ first MLP conv and
#           InstanceNorm partial stats for cross=True).
# --------------------------------------------------------------------------- #
def _attn_message_kernel(x_ref, k_ref, v_ref, wq_ref, bq_ref, wm_ref, bm_ref,
                         *rest, num_heads, cross, m_true, n_true):
    if cross:
        w1x_ref, w1m_ref, b1_ref, o_ref, stats_ref, att_scr = rest
    else:
        o_ref, att_scr = rest

    x = x_ref[0]                                            # (TN, D) bf16
    TN, D = x.shape
    H = num_heads
    hd = D // H
    M_pad = k_ref.shape[-1]

    # q projection: one lane-dense MXU matmul (softmax scale folded into wq/bq).
    q_full = jnp.dot(x, wq_ref[...], preferred_element_type=jnp.float32) + bq_ref[...]

    # Per-head attention: only one (TN, M_pad) f32 score/exp slab live at a time.
    for h in range(H):
        sl = slice(h * hd, (h + 1) * hd)
        q_h = q_full[:, sl].astype(jnp.bfloat16)            # (TN, hd)
        s = jnp.dot(q_h, k_ref[0, h], preferred_element_type=jnp.float32)  # (TN, M_pad)
        if m_true != M_pad:                                 # mask zero-padded source cols
            col = lax.broadcasted_iota(jnp.int32, (TN, M_pad), 1)
            s = jnp.where(col < m_true, s, -1e30)
        mx = jnp.max(s, axis=-1, keepdims=True)
        # NOTE: on v6e/v7x a bf16 exp doubles EUP throughput if EUP-bound; kept f32.
        p = jnp.exp(s - mx)
        inv = pl.reciprocal(jnp.sum(p, axis=-1, keepdims=True), approx=True)   # EUP
        prob = (p * inv).astype(jnp.bfloat16)
        att_scr[:, sl] = jnp.dot(prob, v_ref[0, :, sl],
                                 preferred_element_type=jnp.float32).astype(att_scr.dtype)

    message = jnp.dot(att_scr[...], wm_ref[...],
                      preferred_element_type=jnp.float32) + bm_ref[...]        # (TN, D)

    if not cross:
        o_ref[0] = message.astype(o_ref.dtype)
        return

    # First MLP conv as two matmuls (w1 split on the host -> no lane concat).
    y = (jnp.dot(x, w1x_ref[...], preferred_element_type=jnp.float32)
         + jnp.dot(message.astype(jnp.bfloat16), w1m_ref[...],
                   preferred_element_type=jnp.float32)
         + b1_ref[...])                                     # (TN, 2D) f32
    o_ref[0] = y.astype(o_ref.dtype)                        # bf16 intermediate

    # Per-tile InstanceNorm partials (masked against zero-padded query rows):
    # row 0 = sum(y), row 1 = sum((y - tile_mean)^2).  Combined on the host
    # with the grouped-variance formula (numerically stable vs. E[y^2]-E[y]^2).
    t = pl.program_id(1)
    rows = t * TN + lax.broadcasted_iota(jnp.int32, (TN, 1), 0)
    maskf = (rows < n_true).astype(jnp.float32)             # (TN, 1)
    n_t = jnp.maximum(jnp.sum(maskf), 1.0)
    sum_y = jnp.sum(y * maskf, axis=0, keepdims=True)       # (1, 2D)
    dev = (y - sum_y / n_t) * maskf
    m2 = jnp.sum(dev * dev, axis=0, keepdims=True)          # (1, 2D)
    stats_ref[0, 0] = jnp.concatenate(
        [sum_y, m2, jnp.zeros((6, y.shape[-1]), jnp.float32)], axis=0)


# --------------------------------------------------------------------------- #
# Kernel C: InstanceNorm apply (precomputed mean / rstd) + ReLU + second conv,
#           tiled over (batch, query-tile).
# --------------------------------------------------------------------------- #
def _norm_mlp_kernel(y_ref, mean_ref, rstd_ref, w2_ref, b2_ref, o_ref):
    y = y_ref[0].astype(jnp.float32)                        # (TN, 2D)
    yn = (y - mean_ref[0]) * rstd_ref[0]
    yr = jnp.maximum(yn, 0.0).astype(jnp.bfloat16)          # ReLU, bf16 for MXU
    o_ref[0] = (jnp.dot(yr, w2_ref[...], preferred_element_type=jnp.float32)
                + b2_ref[...]).astype(o_ref.dtype)


# --------------------------------------------------------------------------- #
# Tile selection (VMEM-budget aware) and wrapper
# --------------------------------------------------------------------------- #
def _pick_query_tile(n, m_pad, d, out_dim, out_bytes, cross, batch, vmem_limit,
                     override=None):
    if override is not None:
        assert override % 8 == 0, "query_tile must be a multiple of 8"
        return override
    cap = min(512, _round_up(n, 8))
    if batch == 1 and n > 8:
        # v7x has 2 TensorCores/chip: keep >= 2 programs on the parallel grid.
        cap = min(cap, max(8, _round_up((n + 1) // 2, 8)))
    cands = sorted({t for t in (512, 384, 256, 128, 64, 32, 16, 8) if t <= cap} | {cap},
                   reverse=True)
    # TN-independent VMEM: K + V blocks (bf16, double-buffered) + weights (2x) + slack.
    w_bytes = 2 * d * d * 2 + (2 * d * out_dim * 2 if cross else 0)
    fixed = 2 * (2 * m_pad * d * 2) + 2 * w_bytes + 2 * _MIB
    for tn in cands:
        per_head = int(2.5 * tn * m_pad * 4)                # one head's scores+exp (f32)
        tiles = (2 * tn * d * 2                             # x tile, double-buffered
                 + 2 * tn * out_dim * out_bytes             # out tile, double-buffered
                 + tn * d * 4 + tn * d * 2                  # q_full f32 + att_scr bf16
                 + (tn * out_dim * 4 if cross else 0))      # y f32 live
        if fixed + per_head + tiles <= vmem_limit:
            return tn
    # TODO(synk): for M so large that even TN=8 overflows the budget, add an
    # M-tile grid axis with a flash-style online-softmax accumulator.
    return 8


def attentional_propagation(x, source, params, *, num_heads, cross,
                            query_tile=None):
    """x, source: (B, D, L) in PyTorch Conv1d layout. Returns (B, D, N) f32."""
    B, D, N = x.shape
    M = source.shape[2]
    assert D % num_heads == 0
    hd = D // num_heads
    scale = 1.0 / (hd ** 0.5)
    f32, bf16 = jnp.float32, jnp.bfloat16

    # PyTorch's .view(B, hd, H, L) splits channel c = d*H + h; reorder the q/k/v
    # projection output channels (and the merge's input channels) to c' = h*hd+d
    # so each head is a contiguous lane slice.
    perm = (jnp.arange(hd)[None, :] * num_heads
            + jnp.arange(num_heads)[:, None]).reshape(-1)

    def wt(w):                       # (out, in) -> (in, out), bf16 MXU operand
        return jnp.asarray(w, f32).T.astype(bf16)

    wq = wt(jnp.asarray(params["wq"], f32)[perm, :] * scale)   # softmax scale folded
    bq = (jnp.asarray(params["bq"], f32)[perm] * scale)[None, :]
    wk = wt(jnp.asarray(params["wk"], f32)[perm, :])
    bk = jnp.asarray(params["bk"], f32)[perm][None, :]
    wv = wt(jnp.asarray(params["wv"], f32)[perm, :])
    bv = jnp.asarray(params["bv"], f32)[perm][None, :]
    wm = wt(jnp.asarray(params["wm"], f32)[:, perm])
    bm = jnp.asarray(params["bm"], f32)[None, :]
    w1 = jnp.asarray(params["w1"], f32)
    w1x, w1m = wt(w1[:, :D]), wt(w1[:, D:])                    # no lane-axis concat
    b1 = jnp.asarray(params["b1"], f32)[None, :]
    w2 = wt(params["w2"])
    b2 = jnp.asarray(params["b2"], f32)[None, :]

    vmem_limit = _vmem_limit_bytes()
    out_dim = 2 * D if cross else D
    out_bytes = 2 if cross else 4                # cross intermediate kept in bf16

    M_pad = _round_up(M, 128)                    # lane-dense (TN, M_pad) scores
    TN = _pick_query_tile(N, M_pad, D, out_dim, out_bytes, cross, B, vmem_limit,
                          override=query_tile)
    NT = (N + TN - 1) // TN
    N_pad = NT * TN

    # channels-last bf16 operands, zero-padded along the length axes.
    x_nd = jnp.transpose(jnp.asarray(x, f32).astype(bf16), (0, 2, 1))       # (B, N, D)
    s_md = jnp.transpose(jnp.asarray(source, f32).astype(bf16), (0, 2, 1))  # (B, M, D)
    if N_pad != N:
        x_nd = jnp.pad(x_nd, ((0, 0), (0, N_pad - N), (0, 0)))
    if M_pad != M:
        s_md = jnp.pad(s_md, ((0, 0), (0, M_pad - M), (0, 0)))

    cp1 = pltpu.CompilerParams(dimension_semantics=("parallel",),
                               vmem_limit_bytes=vmem_limit)
    cp2 = pltpu.CompilerParams(dimension_semantics=("parallel", "parallel"),
                               vmem_limit_bytes=vmem_limit)

    # ---- Kernel A: K/V projection, K stored per-head transposed ----------------
    k_h, v_md = pl.pallas_call(
        functools.partial(_kv_proj_kernel, num_heads=num_heads),
        out_shape=(jax.ShapeDtypeStruct((B, num_heads, hd, M_pad), bf16),
                   jax.ShapeDtypeStruct((B, M_pad, D), bf16)),
        grid_spec=pltpu.PrefetchScalarGridSpec(
            num_scalar_prefetch=0, grid=(B,),
            in_specs=[pl.BlockSpec((1, M_pad, D), lambda b: (b, 0, 0)),
                      pl.BlockSpec((D, D), lambda b: (0, 0)),
                      pl.BlockSpec((1, D), lambda b: (0, 0)),
                      pl.BlockSpec((D, D), lambda b: (0, 0)),
                      pl.BlockSpec((1, D), lambda b: (0, 0))],
            out_specs=[pl.BlockSpec((1, num_heads, hd, M_pad), lambda b: (b, 0, 0, 0)),
                       pl.BlockSpec((1, M_pad, D), lambda b: (b, 0, 0))]),
        compiler_params=cp1,
    )(s_md, wk, bk, wv, bv)

    # ---- Kernel B: attention + merge (+ first MLP conv + norm partials) --------
    in_specs = [
        pl.BlockSpec((1, TN, D), lambda b, t: (b, t, 0)),                     # x tile
        pl.BlockSpec((1, num_heads, hd, M_pad), lambda b, t: (b, 0, 0, 0)),   # K^T
        pl.BlockSpec((1, M_pad, D), lambda b, t: (b, 0, 0)),                  # V
        pl.BlockSpec((D, D), lambda b, t: (0, 0)),                            # wq
        pl.BlockSpec((1, D), lambda b, t: (0, 0)),                            # bq
        pl.BlockSpec((D, D), lambda b, t: (0, 0)),                            # wm
        pl.BlockSpec((1, D), lambda b, t: (0, 0)),                            # bm
    ]
    args = [x_nd, k_h, v_md, wq, bq, wm, bm]
    if cross:
        in_specs += [pl.BlockSpec((D, 2 * D), lambda b, t: (0, 0)),           # w1_x
                     pl.BlockSpec((D, 2 * D), lambda b, t: (0, 0)),           # w1_m
                     pl.BlockSpec((1, 2 * D), lambda b, t: (0, 0))]           # b1
        args += [w1x, w1m, b1]
        out_shape = (jax.ShapeDtypeStruct((B, N_pad, 2 * D), bf16),
                     jax.ShapeDtypeStruct((B, NT, 8, 2 * D), f32))
        out_specs = (pl.BlockSpec((1, TN, 2 * D), lambda b, t: (b, t, 0)),
                     pl.BlockSpec((1, 1, 8, 2 * D), lambda b, t: (b, t, 0, 0)))
    else:
        out_shape = jax.ShapeDtypeStruct((B, N_pad, D), f32)
        out_specs = pl.BlockSpec((1, TN, D), lambda b, t: (b, t, 0))

    stage1 = pl.pallas_call(
        functools.partial(_attn_message_kernel, num_heads=num_heads, cross=cross,
                          m_true=M, n_true=N),
        out_shape=out_shape,
        grid_spec=pltpu.PrefetchScalarGridSpec(
            num_scalar_prefetch=0, grid=(B, NT),
            in_specs=in_specs, out_specs=out_specs,
            scratch_shapes=[pltpu.VMEM((TN, D), bf16)]),       # head-gather scratch
        compiler_params=cp2,
    )(*args)

    if not cross:
        out_nd = stage1
    else:
        y_bf, stats = stage1
        # Numerically stable combine of per-tile (sum, M2) partials.
        sum_y = stats[:, :, 0, :]                              # (B, NT, 2D)
        m2 = stats[:, :, 1, :]
        n_t = jnp.asarray([min(TN, N - t * TN) for t in range(NT)], f32)
        mean = jnp.sum(sum_y, axis=1) / N                      # (B, 2D)
        m_t = sum_y / n_t[None, :, None]
        var = (jnp.sum(m2, axis=1)
               + jnp.sum(n_t[None, :, None] * (m_t - mean[:, None, :]) ** 2,
                         axis=1)) / N
        rstd = lax.rsqrt(var + 1e-5)
        mean3, rstd3 = mean[:, None, :], rstd[:, None, :]      # (B, 1, 2D)

        # ---- Kernel C: norm apply + ReLU + second MLP conv, tiled over N -------
        out_nd = pl.pallas_call(
            _norm_mlp_kernel,
            out_shape=jax.ShapeDtypeStruct((B, N_pad, D), f32),
            grid_spec=pltpu.PrefetchScalarGridSpec(
                num_scalar_prefetch=0, grid=(B, NT),
                in_specs=[pl.BlockSpec((1, TN, 2 * D), lambda b, t: (b, t, 0)),
                          pl.BlockSpec((1, 1, 2 * D), lambda b, t: (b, 0, 0)),
                          pl.BlockSpec((1, 1, 2 * D), lambda b, t: (b, 0, 0)),
                          pl.BlockSpec((2 * D, D), lambda b, t: (0, 0)),
                          pl.BlockSpec((1, D), lambda b, t: (0, 0))],
                out_specs=pl.BlockSpec((1, TN, D), lambda b, t: (b, t, 0))),
            compiler_params=cp2,
        )(y_bf, mean3, rstd3, w2, b2)

    if N_pad != N:
        out_nd = out_nd[:, :N, :]
    return jnp.transpose(out_nd, (0, 2, 1)).astype(f32)        # back to (B, D, N)


# --------------------------------------------------------------------------- #
# Parameters / pure-JAX reference (f32) mirroring the PyTorch module
# --------------------------------------------------------------------------- #
def init_params(key, feature_dim):
    D = feature_dim
    keys = jax.random.split(key, 12)

    def w(k, o, i):
        return jax.random.normal(k, (o, i), jnp.float32) * 0.1

    def bvec(k, o):
        return jax.random.normal(k, (o,), jnp.float32) * 0.1

    return {
        "wq": w(keys[0], D, D), "bq": bvec(keys[1], D),
        "wk": w(keys[2], D, D), "bk": bvec(keys[3], D),
        "wv": w(keys[4], D, D), "bv": bvec(keys[5], D),
        "wm": w(keys[6], D, D), "bm": bvec(keys[7], D),
        "w1": w(keys[8], 2 * D, 2 * D), "b1": bvec(keys[9], 2 * D),
        "w2": w(keys[10], D, 2 * D),    "b2": bvec(keys[11], D),
        # note: the module's unused self.mlp branch has no forward effect.
    }


def reference_forward(x, source, params, *, num_heads, cross):
    B, D, _ = x.shape
    hd = D // num_heads

    def conv1d(w, b, inp):
        return jnp.einsum('oi,bil->bol', w, inp) + b[None, :, None]

    q = conv1d(params["wq"], params["bq"], x)
    k = conv1d(params["wk"], params["bk"], source)
    v = conv1d(params["wv"], params["bv"], source)
    q4 = q.reshape(B, hd, num_heads, -1)
    k4 = k.reshape(B, hd, num_heads, -1)
    v4 = v.reshape(B, hd, num_heads, -1)
    scores = jnp.einsum('bdhn,bdhm->bhnm', q4, k4) / (hd ** 0.5)
    prob = jax.nn.softmax(scores, axis=-1)
    att = jnp.einsum('bhnm,bdhm->bdhn', prob, v4).reshape(B, D, -1)
    message = conv1d(params["wm"], params["bm"], att)
    if not cross:
        return message
    cat = jnp.concatenate([x, message], axis=1)
    y = conv1d(params["w1"], params["b1"], cat)
    mean = jnp.mean(y, axis=-1, keepdims=True)
    var = jnp.mean((y - mean) ** 2, axis=-1, keepdims=True)
    y = (y - mean) / jnp.sqrt(var + 1e-5)
    y = jnp.maximum(y, 0.0)
    return conv1d(params["w2"], params["b2"], y)


if __name__ == "__main__":
    B, D, H = 2, 128, 4
    N, M = 64, 96                 # M=96 exercises the lane-padding + score-mask path
    key = jax.random.PRNGKey(0)
    kx, ks, kp = jax.random.split(key, 3)
    x = jax.random.normal(kx, (B, D, N), jnp.float32)
    source = jax.random.normal(ks, (B, D, M), jnp.float32)
    params = init_params(kp, D)

    # cross=True with query_tile=32 -> NT=2, exercising multi-tile stats combine.
    out_cross = attentional_propagation(x, source, params, num_heads=H,
                                        cross=True, query_tile=32)
    out_plain = attentional_propagation(x, source, params, num_heads=H, cross=False)
    jax.block_until_ready((out_cross, out_plain))

    ref_cross = reference_forward(x, source, params, num_heads=H, cross=True)
    ref_plain = reference_forward(x, source, params, num_heads=H, cross=False)

    assert out_cross.shape == (B, D, N) and out_plain.shape == (B, D, N)

    def rel_err(a, b):
        return float(jnp.linalg.norm(a - b) / (jnp.linalg.norm(b) + 1e-12))

    assert jnp.all(jnp.isfinite(out_cross)) and jnp.all(jnp.isfinite(out_plain))
    assert rel_err(out_cross, ref_cross) < 3e-2, "cross=True mismatch"
    assert rel_err(out_plain, ref_plain) < 3e-2, "cross=False mismatch"
    print("KERNEL_OK")
</pallas_src>

<mosaic_0001>
module attributes {stable_mosaic.version = 11 : i64} {
  func.func @_kv_proj_kernel(%arg0: i32, %arg1: memref<1x128x128xbf16, #tpu.memory_space<vmem>>, %arg2: memref<128x128xbf16, #tpu.memory_space<vmem>>, %arg3: memref<1x128xf32, #tpu.memory_space<vmem>>, %arg4: memref<128x128xbf16, #tpu.memory_space<vmem>>, %arg5: memref<1x128xf32, #tpu.memory_space<vmem>>, %arg6: memref<1x4x32x128xbf16, #tpu.memory_space<vmem>>, %arg7: memref<1x128x128xbf16, #tpu.memory_space<vmem>>) attributes {dimension_semantics = [#tpu.dimension_semantics<parallel>], iteration_bounds = array<i64: 2>, scalar_prefetch = 0 : i64, scratch_operands = 0 : i64, tpu.core_type = #tpu.core_type<tc>, window_params = [{transform_indices = @transform_0, window_bounds = array<i64: 1, 128, 128>}, {pipeline_mode = #tpu.pipeline_mode<synchronous>, transform_indices = @transform_1, window_bounds = array<i64: 128, 128>}, {pipeline_mode = #tpu.pipeline_mode<synchronous>, transform_indices = @transform_2, window_bounds = array<i64: 1, 128>}, {pipeline_mode = #tpu.pipeline_mode<synchronous>, transform_indices = @transform_3, window_bounds = array<i64: 128, 128>}, {pipeline_mode = #tpu.pipeline_mode<synchronous>, transform_indices = @transform_4, window_bounds = array<i64: 1, 128>}, {transform_indices = @transform_5, window_bounds = array<i64: 1, 4, 32, 128>}, {transform_indices = @transform_6, window_bounds = array<i64: 1, 128, 128>}]} {
    %c0 = arith.constant 0 : index
    %c0_0 = arith.constant 0 : index
    %c0_1 = arith.constant 0 : index
    %0 = vector.load %arg1[%c0, %c0_0, %c0_1] : memref<1x128x128xbf16, #tpu.memory_space<vmem>>, vector<1x128x128xbf16>
    %1 = vector.shape_cast %0 : vector<1x128x128xbf16> to vector<128x128xbf16>
    %c0_2 = arith.constant 0 : index
    %c0_3 = arith.constant 0 : index
    %2 = vector.load %arg2[%c0_2, %c0_3] : memref<128x128xbf16, #tpu.memory_space<vmem>>, vector<128x128xbf16>
    %cst = arith.constant dense<0.000000e+00> : vector<128x128xf32>
    %3 = tpu.matmul %1, %2, %cst {dimension_numbers = #tpu.dot_dimension_numbers<[1], [0], [0], [1], [0, 0, 1, 1], [], []>} : vector<128x128xbf16>, vector<128x128xbf16>, vector<128x128xf32> -> vector<128x128xf32>
    %c0_4 = arith.constant 0 : index
    %c0_5 = arith.constant 0 : index
    %4 = vector.load %arg3[%c0_4, %c0_5] : memref<1x128xf32, #tpu.memory_space<vmem>>, vector<1x128xf32>
    %5 = vector.broadcast %4 : vector<1x128xf32> to vector<128x128xf32>
    %6 = arith.addf %3, %5 : vector<128x128xf32>
    %c0_6 = arith.constant 0 : index
    %c0_7 = arith.constant 0 : index
    %7 = vector.load %arg4[%c0_6, %c0_7] : memref<128x128xbf16, #tpu.memory_space<vmem>>, vector<128x128xbf16>
    %cst_8 = arith.constant dense<0.000000e+00> : vector<128x128xf32>
    %8 = tpu.matmul %1, %7, %cst_8 {dimension_numbers = #tpu.dot_dimension_numbers<[1], [0], [0], [1], [0, 0, 1, 1], [], []>} : vector<128x128xbf16>, vector<128x128xbf16>, vector<128x128xf32> -> vector<128x128xf32>
    %c0_9 = arith.constant 0 : index
    %c0_10 = arith.constant 0 : index
    %9 = vector.load %arg5[%c0_9, %c0_10] : memref<1x128xf32, #tpu.memory_space<vmem>>, vector<1x128xf32>
    %10 = vector.broadcast %9 : vector<1x128xf32> to vector<128x128xf32>
    %11 = arith.addf %8, %10 : vector<128x128xf32>
    %12 = arith.truncf %11 : vector<128x128xf32> to vector<128x128xbf16>
    %c0_11 = arith.constant 0 : index
    %c0_12 = arith.constant 0 : index
    %c0_13 = arith.constant 0 : index
    %13 = vector.load %arg7[%c0_11, %c0_12, %c0_13] : memref<1x128x128xbf16, #tpu.memory_space<vmem>>, vector<1x128x128xbf16>
    %14 = vector.shape_cast %13 : vector<1x128x128xbf16> to vector<128x128xbf16>
    %15 = vector.shape_cast %12 : vector<128x128xbf16> to vector<1x128x128xbf16>
    tpu.vector_store %arg7[%c0_11, %c0_12, %c0_13], %15 {strides = array<i32>} : memref<1x128x128xbf16, #tpu.memory_space<vmem>>, vector<1x128x128xbf16>,
    %16 = vector.extract_strided_slice %6 {offsets = [0, 0], sizes = [128, 32], strides = [1, 1]} : vector<128x128xf32> to vector<128x32xf32>
    %17 = arith.truncf %16 : vector<128x32xf32> to vector<128x32xbf16>
    %18 = tpu.transpose %17, [1, 0] : vector<128x32xbf16> -> vector<32x128xbf16>
    %c0_14 = arith.constant 0 : index
    %c0_15 = arith.constant 0 : index
    %c0_16 = arith.constant 0 : index
    %c0_17 = arith.constant 0 : index
    %19 = vector.load %arg6[%c0_14, %c0_15, %c0_16, %c0_17] : memref<1x4x32x128xbf16, #tpu.memory_space<vmem>>, vector<1x1x32x128xbf16>
    %20 = vector.shape_cast %19 : vector<1x1x32x128xbf16> to vector<32x128xbf16>
    %21 = vector.shape_cast %18 : vector<32x128xbf16> to vector<1x1x32x128xbf16>
    tpu.vector_store %arg6[%c0_14, %c0_15, %c0_16, %c0_17], %21 {strides = array<i32>} : memref<1x4x32x128xbf16, #tpu.memory_space<vmem>>, vector<1x1x32x128xbf16>,
    %22 = vector.extract_strided_slice %6 {offsets = [0, 32], sizes = [128, 32], strides = [1, 1]} : vector<128x128xf32> to vector<128x32xf32>
    %23 = arith.truncf %22 : vector<128x32xf32> to vector<128x32xbf16>
    %24 = tpu.transpose %23, [1, 0] : vector<128x32xbf16> -> vector<32x128xbf16>
    %c0_18 = arith.constant 0 : index
    %c1 = arith.constant 1 : index
    %c0_19 = arith.constant 0 : index
    %c0_20 = arith.constant 0 : index
    %25 = vector.load %arg6[%c0_18, %c1, %c0_19, %c0_20] : memref<1x4x32x128xbf16, #tpu.memory_space<vmem>>, vector<1x1x32x128xbf16>
    %26 = vector.shape_cast %25 : vector<1x1x32x128xbf16> to vector<32x128xbf16>
    %27 = vector.shape_cast %24 : vector<32x128xbf16> to vector<1x1x32x128xbf16>
    tpu.vector_store %arg6[%c0_18, %c1, %c0_19, %c0_20], %27 {strides = array<i32>} : memref<1x4x32x128xbf16, #tpu.memory_space<vmem>>, vector<1x1x32x128xbf16>,
    %28 = vector.extract_strided_slice %6 {offsets = [0, 64], sizes = [128, 32], strides = [1, 1]} : vector<128x128xf32> to vector<128x32xf32>
    %29 = arith.truncf %28 : vector<128x32xf32> to vector<128x32xbf16>
    %30 = tpu.transpose %29, [1, 0] : vector<128x32xbf16> -> vector<32x128xbf16>
    %c0_21 = arith.constant 0 : index
    %c2 = arith.constant 2 : index
    %c0_22 = arith.constant 0 : index
    %c0_23 = arith.constant 0 : index
    %31 = vector.load %arg6[%c0_21, %c2, %c0_22, %c0_23] : memref<1x4x32x128xbf16, #tpu.memory_space<vmem>>, vector<1x1x32x128xbf16>
    %32 = vector.shape_cast %31 : vector<1x1x32x128xbf16> to vector<32x128xbf16>
    %33 = vector.shape_cast %30 : vector<32x128xbf16> to vector<1x1x32x128xbf16>
    tpu.vector_store %arg6[%c0_21, %c2, %c0_22, %c0_23], %33 {strides = array<i32>} : memref<1x4x32x128xbf16, #tpu.memory_space<vmem>>, vector<1x1x32x128xbf16>,
    %34 = vector.extract_strided_slice %6 {offsets = [0, 96], sizes = [128, 32], strides = [1, 1]} : vector<128x128xf32> to vector<128x32xf32>
    %35 = arith.truncf %34 : vector<128x32xf32> to vector<128x32xbf16>
    %36 = tpu.transpose %35, [1, 0] : vector<128x32xbf16> -> vector<32x128xbf16>
    %c0_24 = arith.constant 0 : index
    %c3 = arith.constant 3 : index
    %c0_25 = arith.constant 0 : index
    %c0_26 = arith.constant 0 : index
    %37 = vector.load %arg6[%c0_24, %c3, %c0_25, %c0_26] : memref<1x4x32x128xbf16, #tpu.memory_space<vmem>>, vector<1x1x32x128xbf16>
    %38 = vector.shape_cast %37 : vector<1x1x32x128xbf16> to vector<32x128xbf16>
    %39 = vector.shape_cast %36 : vector<32x128xbf16> to vector<1x1x32x128xbf16>
    tpu.vector_store %arg6[%c0_24, %c3, %c0_25, %c0_26], %39 {strides = array<i32>} : memref<1x4x32x128xbf16, #tpu.memory_space<vmem>>, vector<1x1x32x128xbf16>,
    return
  }
  func.func @transform_0(%arg0: i32) -> (i32, i32, i32) {
    %c0_i32 = arith.constant 0 : i32
    %c0_i32_0 = arith.constant 0 : i32
    %c0_i32_1 = arith.constant 0 : i32
    return %arg0, %c0_i32, %c0_i32_0 : i32, i32, i32
  }
  func.func @transform_1(%arg0: i32) -> (i32, i32) {
    %c0_i32 = arith.constant 0 : i32
    %c0_i32_0 = arith.constant 0 : i32
    %c0_i32_1 = arith.constant 0 : i32
    return %c0_i32, %c0_i32_0 : i32, i32
  }
  func.func @transform_2(%arg0: i32) -> (i32, i32) {
    %c0_i32 = arith.constant 0 : i32
    %c0_i32_0 = arith.constant 0 : i32
    %c0_i32_1 = arith.constant 0 : i32
    return %c0_i32, %c0_i32_0 : i32, i32
  }
  func.func @transform_3(%arg0: i32) -> (i32, i32) {
    %c0_i32 = arith.constant 0 : i32
    %c0_i32_0 = arith.constant 0 : i32
    %c0_i32_1 = arith.constant 0 : i32
    return %c0_i32, %c0_i32_0 : i32, i32
  }
  func.func @transform_4(%arg0: i32) -> (i32, i32) {
    %c0_i32 = arith.constant 0 : i32
    %c0_i32_0 = arith.constant 0 : i32
    %c0_i32_1 = arith.constant 0 : i32
    return %c0_i32, %c0_i32_0 : i32, i32
  }
  func.func @transform_5(%arg0: i32) -> (i32, i32, i32, i32) {
    %c0_i32 = arith.constant 0 : i32
    %c0_i32_0 = arith.constant 0 : i32
    %c0_i32_1 = arith.constant 0 : i32
    %c0_i32_2 = arith.constant 0 : i32
    return %arg0, %c0_i32, %c0_i32_0, %c0_i32_1 : i32, i32, i32, i32
  }
  func.func @transform_6(%arg0: i32) -> (i32, i32, i32) {
    %c0_i32 = arith.constant 0 : i32
    %c0_i32_0 = arith.constant 0 : i32
    %c0_i32_1 = arith.constant 0 : i32
    return %arg0, %c0_i32, %c0_i32_0 : i32, i32, i32
  }
}

</mosaic_0001>

<llo_original>
// kernel: tpu_custom_call.1
$region0: #{tpu_custom_call.1}
  #allocation0 [shape = 'u32[]', space=smem, size = 0x4, offset = 0x4, fixed_abs, tag = 'smem constant byte address 0x4 - core index']
  #allocation1 [shape = 'u32[144,128]{1,0:T(1,128)}', space=vmem, size = 0x12000, scoped, tag = 'internal scratch']
  %s0 = inlined_call_operand.hbm [shape: bf16[2,128,128], index: 0, kind: input, shape index: {}]
  %s1 = inlined_call_operand.hbm [shape: bf16[128,128], index: 1, kind: input, shape index: {}]
  %s2 = inlined_call_operand.vmem [shape: f32[1,128], index: 2, kind: input, shape index: {}]
  %s3 = inlined_call_operand.hbm [shape: bf16[128,128], index: 3, kind: input, shape index: {}]
  %s4 = inlined_call_operand.vmem [shape: f32[1,128], index: 4, kind: input, shape index: {}]
  %s5 = inlined_call_operand.hbm [shape: bf16[2,4,32,128], index: 5, kind: output, shape index: {0}]
  %s6 = inlined_call_operand.hbm [shape: bf16[2,128,128], index: 6, kind: output, shape index: {1}]
  %7 = xla_tuple %s5, %s6
  %s8 = sld [smem:[#allocation0]]
  $region73: #{tpu_custom_call.1} parent=0
    _
  %s10 = ssub.s32 1, %s8
  %s11 = scalar_select 0, %s10, %s8
  $region1: #{tpu_custom_call.1} parent=0
    #allocation2 [shape = 'u8[65536]{0}', space=vmem, size = 0x10000, scoped, tag = 'input window, operand 0']
    #allocation3 [shape = 's32[2]{0}', space=sflag, size = 0x8, scoped, tag = 'scoped memory for tpu_custom_call.1']
    #allocation4 [shape = 's32[2]{0}', space=sflag, size = 0x8, scoped, tag = 'scoped memory for tpu_custom_call.1']
    #allocation5 [shape = 'u8[32768]{0}', space=vmem, size = 0x8000, scoped, tag = 'input window, operand 1, single buffered']
    #allocation6 [shape = 's32[1]{0}', space=sflag, size = 0x4, scoped, tag = 'scoped memory for tpu_custom_call.1']
    #allocation7 [shape = 'u8[32768]{0}', space=vmem, size = 0x8000, scoped, tag = 'input window, operand 3, single buffered']
    #allocation8 [shape = 'u8[65536]{0}', space=vmem, size = 0x10000, scoped, tag = 'output window, operand 0']
    #allocation9 [shape = 'u8[65536]{0}', space=vmem, size = 0x10000, scoped, tag = 'output window, operand 1']
    #allocation10 [shape = 's32[2]{0}', space=sflag, size = 0x8, scoped, tag = 'scoped memory for tpu_custom_call.1']
    %12 = vsyncpa [#allocation3], 0
    %s13 = scalar_lea.sflag [#allocation3], 1
    %14 = vsyncpa %s13, 0
    %15 = vsyncpa [#allocation6], 0
    %16 = vsyncpa [#allocation4], 0
    %s17 = scalar_lea.sflag [#allocation4], 1
    %18 = vsyncpa %s17, 0
    %19 = vsyncpa [#allocation10], 0
    %s20 = scalar_lea.sflag [#allocation10], 1
    %21 = vsyncpa %s20, 0
    loop: start=0, step=1, limit=4
    $region2: #{tpu_custom_call.1} parent=1 // loop_pre_header
      _
    $region3: #{tpu_custom_call.1} parent=1 // loop_header
      %s23 = sphi 0, %s27
      %p24 = scmp.ge.s32.totalorder %s23, 4
      %s33 = sphi 0, %s35
      %s36 = sphi 0, %s33
      %s37 = sphi 0, %s36
      %s53 = sphi 0, %s37
      %s57 = sphi 0, %s57
      %s59 = sphi 0, %s57
      %s60 = sphi 0, %s59
      %s74 = sphi 0, %s60
      %s78 = sphi 0, %s78
      %s80 = sphi 0, %s78
      %s81 = sphi 0, %s80
      %s95 = sphi 0, %s81
      %s99 = sphi 0, %s99
      %s101 = sphi 0, %s99
      %s102 = sphi 0, %s101
      %s116 = sphi 0, %s102
      %s120 = sphi 0, %s120
      %s122 = sphi 0, %s120
      %s123 = sphi 0, %s122
      %s137 = sphi 0, %s123
      %s143 = sphi 0, %s145
      %s146 = sphi 0, %s143
      %s147 = sphi 0, %s146
      %s163 = sphi 0, %s147
      %s169 = sphi 0, %s171
      %s172 = sphi 0, %s169
      %s173 = sphi 0, %s172
      %s189 = sphi 0, %s173
    $region4: #{tpu_custom_call.1} parent=1 // loop_header_branch
      %26 = sbr.rel (%p24) target = $region8
    $region5: #{tpu_custom_call.1} parent=1 // loop_body
      %s28 = ssub.s32 %s23, 1
      %s29 = ssub.s32 %s23, 2
      %s30 = sadd.s32 %s23, 1
      %s31 = ssub.s32 %s23, %s30
      %p32 = scmp.eq.s32.totalorder %s31, 0
      %s34 = sadd.s32 %s33, 1
      %s35 = scalar_select %p32, %s33, %s34
      %p38 = pneg %p32
      %p39 = scmp.eq.s32.totalorder %s23, 1
      %p40 = por %p38, %p39
      %p41 = scmp.ne.s32.totalorder %s33, %s36
      %p42 = scmp.eq.s32.totalorder %s23, 0
      %p43 = por %p41, %p42
      %p44 = scmp.ne.s32.totalorder %s33, %s36
      %p45 = scmp.eq.s32.totalorder %s28, 1
      %p46 = por %p44, %p45
      %p47 = scmp.ne.s32.totalorder %s36, %s37
      %p48 = scmp.eq.s32.totalorder %s28, 0
      %p49 = por %p47, %p48
      %p50 = scmp.ne.s32.totalorder %s36, %s37
      %p51 = scmp.eq.s32.totalorder %s29, 1
      %p52 = por %p50, %p51
      %p54 = scmp.ne.s32.totalorder %s37, %s53
      %p55 = scmp.eq.s32.totalorder %s29, 0
      %p56 = por %p54, %p55
      %s58 = sadd.s32 %s57, 1
      %p61 = scmp.eq.s32.totalorder %s23, 1
      %p62 = scmp.ne.s32.totalorder %s57, %s59
      %p63 = scmp.eq.s32.totalorder %s23, 0
      %p64 = por %p62, %p63
      %p65 = scmp.ne.s32.totalorder %s57, %s59
      %p66 = scmp.eq.s32.totalorder %s28, 1
      %p67 = por %p65, %p66
      %p68 = scmp.ne.s32.totalorder %s59, %s60
      %p69 = scmp.eq.s32.totalorder %s28, 0
      %p70 = por %p68, %p69
      %p71 = scmp.ne.s32.totalorder %s59, %s60
      %p72 = scmp.eq.s32.totalorder %s29, 1
      %p73 = por %p71, %p72
      %p75 = scmp.ne.s32.totalorder %s60, %s74
      %p76 = scmp.eq.s32.totalorder %s29, 0
      %p77 = por %p75, %p76
      %s79 = sadd.s32 %s78, 1
      %p82 = scmp.eq.s32.totalorder %s23, 1
      %p83 = scmp.ne.s32.totalorder %s78, %s80
      %p84 = scmp.eq.s32.totalorder %s23, 0
      %p85 = por %p83, %p84
      %p86 = scmp.ne.s32.totalorder %s78, %s80
      %p87 = scmp.eq.s32.totalorder %s28, 1
      %p88 = por %p86, %p87
      %p89 = scmp.ne.s32.totalorder %s80, %s81
      %p90 = scmp.eq.s32.totalorder %s28, 0
      %p91 = por %p89, %p90
      %p92 = scmp.ne.s32.totalorder %s80, %s81
      %p93 = scmp.eq.s32.totalorder %s29, 1
      %p94 = por %p92, %p93
      %p96 = scmp.ne.s32.totalorder %s81, %s95
      %p97 = scmp.eq.s32.totalorder %s29, 0
      %p98 = por %p96, %p97
      %s100 = sadd.s32 %s99, 1
      %p103 = scmp.eq.s32.totalorder %s23, 1
      %p104 = scmp.ne.s32.totalorder %s99, %s101
      %p105 = scmp.eq.s32.totalorder %s23, 0
      %p106 = por %p104, %p105
      %p107 = scmp.ne.s32.totalorder %s99, %s101
      %p108 = scmp.eq.s32.totalorder %s28, 1
      %p109 = por %p107, %p108
      %p110 = scmp.ne.s32.totalorder %s101, %s102
      %p111 = scmp.eq.s32.totalorder %s28, 0
      %p112 = por %p110, %p111
      %p113 = scmp.ne.s32.totalorder %s101, %s102
      %p114 = scmp.eq.s32.totalorder %s29, 1
      %p115 = por %p113, %p114
      %p117 = scmp.ne.s32.totalorder %s102, %s116
      %p118 = scmp.eq.s32.totalorder %s29, 0
      %p119 = por %p117, %p118
      %s121 = sadd.s32 %s120, 1
      %p124 = scmp.eq.s32.totalorder %s23, 1
      %p125 = scmp.ne.s32.totalorder %s120, %s122
      %p126 = scmp.eq.s32.totalorder %s23, 0
      %p127 = por %p125, %p126
      %p128 = scmp.ne.s32.totalorder %s120, %s122
      %p129 = scmp.eq.s32.totalorder %s28, 1
      %p130 = por %p128, %p129
      %p131 = scmp.ne.s32.totalorder %s122, %s123
      %p132 = scmp.eq.s32.totalorder %s28, 0
      %p133 = por %p131, %p132
      %p134 = scmp.ne.s32.totalorder %s122, %s123
      %p135 = scmp.eq.s32.totalorder %s29, 1
      %p136 = por %p134, %p135
      %p138 = scmp.ne.s32.totalorder %s123, %s137
      %p139 = scmp.eq.s32.totalorder %s29, 0
      %p140 = por %p138, %p139
      %s141 = ssub.s32 %s23, %s30
      %p142 = scmp.eq.s32.totalorder %s141, 0
      %s144 = sadd.s32 %s143, 1
      %s145 = scalar_select %p142, %s143, %s144
      %p148 = pneg %p142
      %p149 = scmp.eq.s32.totalorder %s23, 1
      %p150 = por %p148, %p149
      %p151 = scmp.ne.s32.totalorder %s143, %s146
      %p152 = scmp.eq.s32.totalorder %s23, 0
      %p153 = por %p151, %p152
      %p154 = scmp.ne.s32.totalorder %s143, %s146
      %p155 = scmp.eq.s32.totalorder %s28, 1
      %p156 = por %p154, %p155
      %p157 = scmp.ne.s32.totalorder %s146, %s147
      %p158 = scmp.eq.s32.totalorder %s28, 0
      %p159 = por %p157, %p158
      %p160 = scmp.ne.s32.totalorder %s146, %s147
      %p161 = scmp.eq.s32.totalorder %s29, 1
      %p162 = por %p160, %p161
      %p164 = scmp.ne.s32.totalorder %s147, %s163
      %p165 = scmp.eq.s32.totalorder %s29, 0
      %p166 = por %p164, %p165
      %s167 = ssub.s32 %s23, %s30
      %p168 = scmp.eq.s32.totalorder %s167, 0
      %s170 = sadd.s32 %s169, 1
      %s171 = scalar_select %p168, %s169, %s170
      %p174 = pneg %p168
      %p175 = scmp.eq.s32.totalorder %s23, 1
      %p176 = por %p174, %p175
      %p177 = scmp.ne.s32.totalorder %s169, %s172
      %p178 = scmp.eq.s32.totalorder %s23, 0
      %p179 = por %p177, %p178
      %p180 = scmp.ne.s32.totalorder %s169, %s172
      %p181 = scmp.eq.s32.totalorder %s28, 1
      %p182 = por %p180, %p181
      %p183 = scmp.ne.s32.totalorder %s172, %s173
      %p184 = scmp.eq.s32.totalorder %s28, 0
      %p185 = por %p183, %p184
      %p186 = scmp.ne.s32.totalorder %s172, %s173
      %p187 = scmp.eq.s32.totalorder %s29, 1
      %p188 = por %p186, %p187
      %p190 = scmp.ne.s32.totalorder %s173, %s189
      %p191 = scmp.eq.s32.totalorder %s29, 0
      %p192 = por %p190, %p191
      %p193 = scmp.le.s32.totalorder 1, %s23
      %p194 = scmp.lt.s32.totalorder %s23, 3
      %p195 = pnand %p193, %p194
      %p196 = pneg %p195
      // Predicated region
      $region9: #{tpu_custom_call.1} parent=5 // pred_check
        _
      $region10: #{tpu_custom_call.1} parent=5 // pred_check_branch
        %198 = sbr.rel (%p195) target = $region12
      $region11: #{tpu_custom_call.1} parent=5 // pred_region
        %s199 = ssub.s32 %s23, 1
        // Predicated region
        $region13: #{tpu_custom_call.1} parent=11 // pred_check
          %p200 = pneg %p70
        $region14: #{tpu_custom_call.1} parent=11 // pred_check_branch
          %202 = sbr.rel (%p200) target = $region16
        $region15: #{tpu_custom_call.1} parent=11 // pred_region
          %s204 = ssub.s32 1024, 1024
          %205 = vsyncadd [#allocation6], %s204
          %s206 = sshll.u32 [#allocation5], 4
          %s207 = int_to_ptr.vmem [resolvable:$true] %s206
          %212 = dma.hbm_to_vmem [thread:$0]  %s1, 1024, %s207, [#allocation6], 64, 64, 4
        $region16: #{tpu_custom_call.1} parent=11 // pred_fallthru
          _
        // Predicated region
        $region17: #{tpu_custom_call.1} parent=11 // pred_check
          %p213 = pneg %p91
        $region18: #{tpu_custom_call.1} parent=11 // pred_check_branch
          %215 = sbr.rel (%p213) target = $region20
        $region19: #{tpu_custom_call.1} parent=11 // pred_region
          _
        $region20: #{tpu_custom_call.1} parent=11 // pred_fallthru
          _
        // Predicated region
        $region21: #{tpu_custom_call.1} parent=11 // pred_check
          %p216 = pneg %p112
        $region22: #{tpu_custom_call.1} parent=11 // pred_check_branch
          %218 = sbr.rel (%p216) target = $region24
        $region23: #{tpu_custom_call.1} parent=11 // pred_region
          %s220 = ssub.s32 1024, 1024
          %221 = vsyncadd [#allocation6], %s220
          %s222 = sshll.u32 [#allocation7], 4
          %s223 = int_to_ptr.vmem [resolvable:$true] %s222
          %228 = dma.hbm_to_vmem [thread:$0]  %s3, 1024, %s223, [#allocation6], 64, 64, 4
        $region24: #{tpu_custom_call.1} parent=11 // pred_fallthru
          _
        // Predicated region
        $region25: #{tpu_custom_call.1} parent=11 // pred_check
          %p229 = pneg %p133
        $region26: #{tpu_custom_call.1} parent=11 // pred_check_branch
          %231 = sbr.rel (%p229) target = $region28
        $region27: #{tpu_custom_call.1} parent=11 // pred_region
          _
        $region28: #{tpu_custom_call.1} parent=11 // pred_fallthru
          _
      $region12: #{tpu_custom_call.1} parent=5 // pred_fallthru
        _
      %p232 = scmp.lt.s32.totalorder %s23, 2
      // Predicated region
      $region29: #{tpu_custom_call.1} parent=5 // pred_check
        %p233 = pneg %p232
      $region30: #{tpu_custom_call.1} parent=5 // pred_check_branch
        %235 = sbr.rel (%p233) target = $region32
      $region31: #{tpu_custom_call.1} parent=5 // pred_region
        // Predicated region
        $region33: #{tpu_custom_call.1} parent=31 // pred_check
          %p236 = pneg %p43
        $region34: #{tpu_custom_call.1} parent=31 // pred_check_branch
          %238 = sbr.rel (%p236) target = $region36
        $region35: #{tpu_custom_call.1} parent=31 // pred_region
          %s239 = sand.u32 %s33, 1
          %s240 = scalar_lea.sflag [#allocation3], %s239
          %s241 = sand.u32 %s33, 1
          %s242 = smul.addr %s241, 64
          %s243 = scalar_lea.vmem [#allocation2], %s242
          %s245 = ssub.s32 1024, 1024
          %246 = vsyncadd %s240, %s245
          %s247 = smul.addr %s23, 16
          %s248 = smul.addr %s247, 64
          %s249 = scalar_lea.hbm %s0, %s248
          %s250 = sshll.u32 %s243, 4
          %s251 = int_to_ptr.vmem [resolvable:$true] %s250
          %256 = dma.hbm_to_vmem [thread:$0]  %s249, 1024, %s251, %s240, 64, 64, 4
        $region36: #{tpu_custom_call.1} parent=31 // pred_fallthru
          _
      $region32: #{tpu_custom_call.1} parent=5 // pred_fallthru
        _
      %p257 = scmp.le.s32.totalorder 1, %s23
      %p258 = scmp.lt.s32.totalorder %s23, 3
      %p259 = pnand %p257, %p258
      %p260 = pneg %p259
      // Predicated region
      $region37: #{tpu_custom_call.1} parent=5 // pred_check
        _
      $region38: #{tpu_custom_call.1} parent=5 // pred_check_branch
        %262 = sbr.rel (%p259) target = $region40
      $region39: #{tpu_custom_call.1} parent=5 // pred_region
        %s263 = ssub.s32 %s23, 1
        %s264 = sand.u32 %s36, 1
        %s265 = scalar_lea.sflag [#allocation3], %s264
        %s266 = sand.u32 %s36, 1
        %s267 = smul.addr %s266, 64
        %s268 = scalar_lea.vmem [#allocation2], %s267
        // Predicated region
        $region41: #{tpu_custom_call.1} parent=39 // pred_check
          %p269 = pneg %p49
        $region42: #{tpu_custom_call.1} parent=39 // pred_check_branch
          %271 = sbr.rel (%p269) target = $region44
        $region43: #{tpu_custom_call.1} parent=39 // pred_region
          %272 = dma.done %s265, 1024
        $region44: #{tpu_custom_call.1} parent=39 // pred_fallthru
          _
        // Predicated region
        $region45: #{tpu_custom_call.1} parent=39 // pred_check
          %p273 = pneg %p70
        $region46: #{tpu_custom_call.1} parent=39 // pred_check_branch
          %275 = sbr.rel (%p273) target = $region48
        $region47: #{tpu_custom_call.1} parent=39 // pred_region
          %276 = dma.done [#allocation6], 1024
        $region48: #{tpu_custom_call.1} parent=39 // pred_fallthru
          _
        // Predicated region
        $region49: #{tpu_custom_call.1} parent=39 // pred_check
          %p277 = pneg %p112
        $region50: #{tpu_custom_call.1} parent=39 // pred_check_branch
          %279 = sbr.rel (%p277) target = $region52
        $region51: #{tpu_custom_call.1} parent=39 // pred_region
          %280 = dma.done [#allocation6], 1024
        $region52: #{tpu_custom_call.1} parent=39 // pred_fallthru
          _
        %s281 = sand.u32 %s36, 1
        %s282 = scalar_lea.sflag [#allocation3], %s281
        %s283 = sand.u32 %s36, 1
        %s284 = smul.addr %s283, 64
        %s285 = scalar_lea.vmem [#allocation2], %s284
        %p286 = pneg %p49
        %p287 = pneg %p46
        %p288 = pneg %p70
        %p289 = pneg %p67
        %p290 = pneg %p91
        %p291 = pneg %p88
        %p292 = pneg %p112
        %p293 = pneg %p109
        %p294 = pneg %p133
        %p295 = pneg %p130
        %p296 = pneg %p159
        %p297 = pneg %p156
        %s298 = sand.u32 %s146, 1
        %s299 = scalar_lea.sflag [#allocation4], %s298
        %s300 = sand.u32 %s146, 1
        %s301 = smul.addr %s300, 64
        %s302 = scalar_lea.vmem [#allocation8], %s301
        %p303 = pneg %p185
        %p304 = pneg %p182
        %s305 = sand.u32 %s172, 1
        %s306 = scalar_lea.sflag [#allocation10], %s305
        %s307 = sand.u32 %s172, 1
        %s308 = smul.addr %s307, 64
        %s309 = scalar_lea.vmem [#allocation9], %s308
        %v311 = vld [vmem:[%s268] sm:$0xf]
        %v312 = vld [vmem:[%s268 + $0x4] sm:$0xf]
        %v313 = vld [vmem:[%s268 + $0x8] sm:$0xf]
        %v314 = vld [vmem:[%s268 + $0xc] sm:$0xf]
        %v315 = vld [vmem:[%s268 + $0x10] sm:$0xf]
        %v316 = vld [vmem:[%s268 + $0x14] sm:$0xf]
        %v317 = vld [vmem:[%s268 + $0x18] sm:$0xf]
        %v318 = vld [vmem:[%s268 + $0x1c] sm:$0xf]
        %v319 = vld [vmem:[%s268 + $0x20] sm:$0xf]
        %v320 = vld [vmem:[%s268 + $0x24] sm:$0xf]
        %v321 = vld [vmem:[%s268 + $0x28] sm:$0xf]
        %v322 = vld [vmem:[%s268 + $0x2c] sm:$0xf]
        %v323 = vld [vmem:[%s268 + $0x30] sm:$0xf]
        %v324 = vld [vmem:[%s268 + $0x34] sm:$0xf]
        %v325 = vld [vmem:[%s268 + $0x38] sm:$0xf]
        %v326 = vld [vmem:[%s268 + $0x3c] sm:$0xf]
        %v327 = vld [vmem:[#allocation5] sm:$0xf]
        %v328 = vld [vmem:[#allocation5 + $0x4] sm:$0xf]
        %v329 = vld [vmem:[#allocation5 + $0x8] sm:$0xf]
        %v330 = vld [vmem:[#allocation5 + $0xc] sm:$0xf]
        %v331 = vld [vmem:[#allocation5 + $0x10] sm:$0xf]
        %v332 = vld [vmem:[#allocation5 + $0x14] sm:$0xf]
        %v333 = vld [vmem:[#allocation5 + $0x18] sm:$0xf]
        %v334 = vld [vmem:[#allocation5 + $0x1c] sm:$0xf]
        %v335 = vld [vmem:[#allocation5 + $0x20] sm:$0xf]
        %v336 = vld [vmem:[#allocation5 + $0x24] sm:$0xf]
        %v337 = vld [vmem:[#allocation5 + $0x28] sm:$0xf]
        %v338 = vld [vmem:[#allocation5 + $0x2c] sm:$0xf]
        %v339 = vld [vmem:[#allocation5 + $0x30] sm:$0xf]
        %v340 = vld [vmem:[#allocation5 + $0x34] sm:$0xf]
        %v341 = vld [vmem:[#allocation5 + $0x38] sm:$0xf]
        %v342 = vld [vmem:[#allocation5 + $0x3c] sm:$0xf]
        %v343 = vld [vmem:[%s2] sm:$0x1]
        %v345 = vlaneseq
        %v346 = vshrl.u32 %v345, 7
        %v347 = vsub.s32 0, %v346
        %v348 = vrot.slane %v343, %v347
        %v366 = vunpack.c.l.b16 %v311
        %v367 = vunpack.c.l.b16 %v312
        %v368 = vunpack.c.l.b16 %v313
        %v369 = vunpack.c.l.b16 %v314
        %v370 = vunpack.c.l.b16 %v315
        %v371 = vunpack.c.l.b16 %v316
        %v372 = vunpack.c.l.b16 %v317
        %v373 = vunpack.c.l.b16 %v318
        %v374 = vunpack.c.l.b16 %v319
        %v375 = vunpack.c.l.b16 %v320
        %v376 = vunpack.c.l.b16 %v321
        %v377 = vunpack.c.l.b16 %v322
        %v378 = vunpack.c.l.b16 %v323
        %v379 = vunpack.c.l.b16 %v324
        %v380 = vunpack.c.l.b16 %v325
        %v381 = vunpack.c.l.b16 %v326
        %v382 = vpack.c.b16 %v367, %v366
        %v383 = vpack.c.b16 %v369, %v368
        %v384 = vpack.c.b16 %v371, %v370
        %v385 = vpack.c.b16 %v373, %v372
        %v386 = vpack.c.b16 %v375, %v374
        %v387 = vpack.c.b16 %v377, %v376
        %v388 = vpack.c.b16 %v379, %v378
        %v389 = vpack.c.b16 %v381, %v380
        %v414 = vunpack.c.l.b16 %v327
        %v415 = vunpack.c.l.b16 %v328
        %v416 = vunpack.c.l.b16 %v329
        %v417 = vunpack.c.l.b16 %v330
        %v418 = vunpack.c.l.b16 %v331
        %v419 = vunpack.c.l.b16 %v332
        %v420 = vunpack.c.l.b16 %v333
        %v421 = vunpack.c.l.b16 %v334
        %v422 = vunpack.c.l.b16 %v335
        %v423 = vunpack.c.l.b16 %v336
        %v424 = vunpack.c.l.b16 %v337
        %v425 = vunpack.c.l.b16 %v338
        %v426 = vunpack.c.l.b16 %v339
        %v427 = vunpack.c.l.b16 %v340
        %v428 = vunpack.c.l.b16 %v341
        %v429 = vunpack.c.l.b16 %v342
        %v430 = vpack.c.b16 %v415, %v414
        %v431 = vpack.c.b16 %v417, %v416
        %v432 = vpack.c.b16 %v419, %v418
        %v433 = vpack.c.b16 %v421, %v420
        %v434 = vpack.c.b16 %v423, %v422
        %v435 = vpack.c.b16 %v425, %v424
        %v436 = vpack.c.b16 %v427, %v426
        %v437 = vpack.c.b16 %v429, %v428
        %446 = vmatprep.subr.bf16.mxu0 0
        %447 = vmatpush1.bf16.msra.mxu0 %v430
        %448 = vmatprep.subr.bf16.mxu0 0
        %449 = vmatpush1.bf16.msra.mxu0 %v431
        %450 = vmatprep.subr.bf16.mxu0 0
        %451 = vmatpush1.bf16.msra.mxu0 %v432
        %452 = vmatprep.subr.bf16.mxu0 0
        %453 = vmatpush1.bf16.msra.mxu0 %v433
        %454 = vmatprep.subr.bf16.mxu0 0
        %455 = vmatpush1.bf16.msra.mxu0 %v434
        %456 = vmatprep.subr.bf16.mxu0 0
        %457 = vmatpush1.bf16.msra.mxu0 %v435
        %458 = vmatprep.subr.bf16.mxu0 0
        %459 = vmatpush1.bf16.msra.mxu0 %v436
        %460 = vmatprep.subr.bf16.mxu0 0
        %461 = vmatpush1.bf16.msra.mxu0 %v437
        %462 = vmatprep.subr.bf16.mxu0 0
        %463 = vmatpush1.bf16.msra.mxu0 0
        %464 = vmatprep.subr.bf16.mxu0 0
        %465 = vmatpush1.bf16.msra.mxu0 0
        %466 = vmatprep.subr.bf16.mxu0 0
        %467 = vmatpush1.bf16.msra.mxu0 0
        %468 = vmatprep.subr.bf16.mxu0 0
        %469 = vmatpush1.bf16.msra.mxu0 0
        %470 = vmatprep.subr.bf16.mxu0 0
        %471 = vmatpush1.bf16.msra.mxu0 0
        %472 = vmatprep.subr.bf16.mxu0 0
        %473 = vmatpush1.bf16.msra.mxu0 0
        %474 = vmatprep.subr.bf16.mxu0 0
        %475 = vmatpush1.bf16.msra.mxu0 0
        %476 = vmatprep.subr.bf16.mxu0 0
        %477 = vmatpush1.bf16.msra.mxu0 0
        %478 = vmatprep.mubr.bf16.mxu0 0
        %479 = vmatmul.mubr.bf16.gmra.mrb[0].mxu0 %v382
        %v480 = vpop.f32.mrb[0].mxu0
        %v481 = vadd.f32 %v348, %v480
        %v482 = vpop.f32.mrb[0].mxu0
        %v483 = vpop.f32.mrb[0].mxu0
        %v484 = vadd.f32 %v348, %v483
        %v485 = vpop.f32.mrb[0].mxu0
        %486 = vmatprep.mubr.bf16.mxu0 0
        %487 = vmatmul.mubr.bf16.gmra.mrb[0].mxu0 %v383
        %v488 = vpop.f32.mrb[0].mxu0
        %v489 = vadd.f32 %v348, %v488
        %v490 = vpop.f32.mrb[0].mxu0
        %v491 = vpop.f32.mrb[0].mxu0
        %v492 = vadd.f32 %v348, %v491
        %v493 = vpop.f32.mrb[0].mxu0
        %494 = vmatprep.mubr.bf16.mxu0 0
        %495 = vmatmul.mubr.bf16.gmra.mrb[0].mxu0 %v384
        %v496 = vpop.f32.mrb[0].mxu0
        %v497 = vadd.f32 %v348, %v496
        %v498 = vpop.f32.mrb[0].mxu0
        %v499 = vpop.f32.mrb[0].mxu0
        %v500 = vadd.f32 %v348, %v499
        %v501 = vpop.f32.mrb[0].mxu0
        %502 = vmatprep.mubr.bf16.mxu0 0
        %503 = vmatmul.mubr.bf16.gmra.mrb[0].mxu0 %v385
        %v504 = vpop.f32.mrb[0].mxu0
        %v505 = vadd.f32 %v348, %v504
        %v506 = vpop.f32.mrb[0].mxu0
        %v507 = vpop.f32.mrb[0].mxu0
        %v508 = vadd.f32 %v348, %v507
        %v509 = vpop.f32.mrb[0].mxu0
        %510 = vmatprep.mubr.bf16.mxu0 0
        %511 = vmatmul.mubr.bf16.gmra.mrb[0].mxu0 %v386
        %v512 = vpop.f32.mrb[0].mxu0
        %v513 = vadd.f32 %v348, %v512
        %v514 = vpop.f32.mrb[0].mxu0
        %v515 = vpop.f32.mrb[0].mxu0
        %v516 = vadd.f32 %v348, %v515
        %v517 = vpop.f32.mrb[0].mxu0
        %518 = vmatprep.mubr.bf16.mxu0 0
        %519 = vmatmul.mubr.bf16.gmra.mrb[0].mxu0 %v387
        %v520 = vpop.f32.mrb[0].mxu0
        %v521 = vadd.f32 %v348, %v520
        %v522 = vpop.f32.mrb[0].mxu0
        %v523 = vpop.f32.mrb[0].mxu0
        %v524 = vadd.f32 %v348, %v523
        %v525 = vpop.f32.mrb[0].mxu0
        %526 = vmatprep.mubr.bf16.mxu0 0
        %527 = vmatmul.mubr.bf16.gmra.mrb[0].mxu0 %v388
        %v528 = vpop.f32.mrb[0].mxu0
        %v529 = vadd.f32 %v348, %v528
        %v530 = vpop.f32.mrb[0].mxu0
        %v531 = vpop.f32.mrb[0].mxu0
        %v532 = vadd.f32 %v348, %v531
        %v533 = vpop.f32.mrb[0].mxu0
        %534 = vmatprep.mubr.bf16.mxu0 0
        %535 = vmatmul.mubr.bf16.gmra.mrb[0].mxu0 %v389
        %v536 = vpop.f32.mrb[0].mxu0
        %v537 = vadd.f32 %v348, %v536
        %v538 = vpop.f32.mrb[0].mxu0
        %v539 = vpop.f32.mrb[0].mxu0
        %v540 = vadd.f32 %v348, %v539
        %v541 = vpop.f32.mrb[0].mxu0
        %542 = vdwg.mxu0
        %v543 = vld [vmem:[#allocation7] sm:$0xf]
        %v544 = vld [vmem:[#allocation7 + $0x4] sm:$0xf]
        %v545 = vld [vmem:[#allocation7 + $0x8] sm:$0xf]
        %v546 = vld [vmem:[#allocation7 + $0xc] sm:$0xf]
        %v547 = vld [vmem:[#allocation7 + $0x10] sm:$0xf]
        %v548 = vld [vmem:[#allocation7 + $0x14] sm:$0xf]
        %v549 = vld [vmem:[#allocation7 + $0x18] sm:$0xf]
        %v550 = vld [vmem:[#allocation7 + $0x1c] sm:$0xf]
        %v551 = vld [vmem:[#allocation7 + $0x20] sm:$0xf]
        %v552 = vld [vmem:[#allocation7 + $0x24] sm:$0xf]
        %v553 = vld [vmem:[#allocation7 + $0x28] sm:$0xf]
        %v554 = vld [vmem:[#allocation7 + $0x2c] sm:$0xf]
        %v555 = vld [vmem:[#allocation7 + $0x30] sm:$0xf]
        %v556 = vld [vmem:[#allocation7 + $0x34] sm:$0xf]
        %v557 = vld [vmem:[#allocation7 + $0x38] sm:$0xf]
        %v558 = vld [vmem:[#allocation7 + $0x3c] sm:$0xf]
        %v559 = vld [vmem:[%s4] sm:$0x1]
        %v561 = vlaneseq
        %v562 = vshrl.u32 %v561, 7
        %v563 = vsub.s32 0, %v562
        %v564 = vrot.slane %v559, %v563
        %v582 = vunpack.c.l.b16 %v543
        %v583 = vunpack.c.l.b16 %v544
        %v584 = vunpack.c.l.b16 %v545
        %v585 = vunpack.c.l.b16 %v546
        %v586 = vunpack.c.l.b16 %v547
        %v587 = vunpack.c.l.b16 %v548
        %v588 = vunpack.c.l.b16 %v549
        %v589 = vunpack.c.l.b16 %v550
        %v590 = vunpack.c.l.b16 %v551
        %v591 = vunpack.c.l.b16 %v552
        %v592 = vunpack.c.l.b16 %v553
        %v593 = vunpack.c.l.b16 %v554
        %v594 = vunpack.c.l.b16 %v555
        %v595 = vunpack.c.l.b16 %v556
        %v596 = vunpack.c.l.b16 %v557
        %v597 = vunpack.c.l.b16 %v558
        %v598 = vpack.c.b16 %v583, %v582
        %v599 = vpack.c.b16 %v585, %v584
        %v600 = vpack.c.b16 %v587, %v586
        %v601 = vpack.c.b16 %v589, %v588
        %v602 = vpack.c.b16 %v591, %v590
        %v603 = vpack.c.b16 %v593, %v592
        %v604 = vpack.c.b16 %v595, %v594
        %v605 = vpack.c.b16 %v597, %v596
        %614 = vmatprep.subr.bf16.mxu0 0
        %615 = vmatpush1.bf16.msra.mxu0 %v598
        %616 = vmatprep.subr.bf16.mxu0 0
        %617 = vmatpush1.bf16.msra.mxu0 %v599
        %618 = vmatprep.subr.bf16.mxu0 0
        %619 = vmatpush1.bf16.msra.mxu0 %v600
        %620 = vmatprep.subr.bf16.mxu0 0
        %621 = vmatpush1.bf16.msra.mxu0 %v601
        %622 = vmatprep.subr.bf16.mxu0 0
        %623 = vmatpush1.bf16.msra.mxu0 %v602
        %624 = vmatprep.subr.bf16.mxu0 0
        %625 = vmatpush1.bf16.msra.mxu0 %v603
        %626 = vmatprep.subr.bf16.mxu0 0
        %627 = vmatpush1.bf16.msra.mxu0 %v604
        %628 = vmatprep.subr.bf16.mxu0 0
        %629 = vmatpush1.bf16.msra.mxu0 %v605
        %630 = vmatprep.subr.bf16.mxu0 0
        %631 = vmatpush1.bf16.msra.mxu0 0
        %632 = vmatprep.subr.bf16.mxu0 0
        %633 = vmatpush1.bf16.msra.mxu0 0
        %634 = vmatprep.subr.bf16.mxu0 0
        %635 = vmatpush1.bf16.msra.mxu0 0
        %636 = vmatprep.subr.bf16.mxu0 0
        %637 = vmatpush1.bf16.msra.mxu0 0
        %638 = vmatprep.subr.bf16.mxu0 0
        %639 = vmatpush1.bf16.msra.mxu0 0
        %640 = vmatprep.subr.bf16.mxu0 0
        %641 = vmatpush1.bf16.msra.mxu0 0
        %642 = vmatprep.subr.bf16.mxu0 0
        %643 = vmatpush1.bf16.msra.mxu0 0
        %644 = vmatprep.subr.bf16.mxu0 0
        %645 = vmatpush1.bf16.msra.mxu0 0
        %646 = vmatprep.mubr.bf16.mxu0 0
        %647 = vmatmul.mubr.bf16.gmra.mrb[0].mxu0 %v382
        %v648 = vpop.f32.mrb[0].mxu0
        %v649 = vadd.f32 %v564, %v648
        %v650 = vpop.f32.mrb[0].mxu0
        %v651 = vpop.f32.mrb[0].mxu0
        %v652 = vadd.f32 %v564, %v651
        %v653 = vpop.f32.mrb[0].mxu0
        %654 = vmatprep.mubr.bf16.mxu0 0
        %655 = vmatmul.mubr.bf16.gmra.mrb[0].mxu0 %v383
        %v656 = vpop.f32.mrb[0].mxu0
        %v657 = vadd.f32 %v564, %v656
        %v658 = vpop.f32.mrb[0].mxu0
        %v659 = vpop.f32.mrb[0].mxu0
        %v660 = vadd.f32 %v564, %v659
        %v661 = vpop.f32.mrb[0].mxu0
        %662 = vmatprep.mubr.bf16.mxu0 0
        %663 = vmatmul.mubr.bf16.gmra.mrb[0].mxu0 %v384
        %v664 = vpop.f32.mrb[0].mxu0
        %v665 = vadd.f32 %v564, %v664
        %v666 = vpop.f32.mrb[0].mxu0
        %v667 = vpop.f32.mrb[0].mxu0
        %v668 = vadd.f32 %v564, %v667
        %v669 = vpop.f32.mrb[0].mxu0
        %670 = vmatprep.mubr.bf16.mxu0 0
        %671 = vmatmul.mubr.bf16.gmra.mrb[0].mxu0 %v385
        %v672 = vpop.f32.mrb[0].mxu0
        %v673 = vadd.f32 %v564, %v672
        %v674 = vpop.f32.mrb[0].mxu0
        %v675 = vpop.f32.mrb[0].mxu0
        %v676 = vadd.f32 %v564, %v675
        %v677 = vpop.f32.mrb[0].mxu0
        %678 = vmatprep.mubr.bf16.mxu0 0
        %679 = vmatmul.mubr.bf16.gmra.mrb[0].mxu0 %v386
        %v680 = vpop.f32.mrb[0].mxu0
        %v681 = vadd.f32 %v564, %v680
        %v682 = vpop.f32.mrb[0].mxu0
        %v683 = vpop.f32.mrb[0].mxu0
        %v684 = vadd.f32 %v564, %v683
        %v685 = vpop.f32.mrb[0].mxu0
        %686 = vmatprep.mubr.bf16.mxu0 0
        %687 = vmatmul.mubr.bf16.gmra.mrb[0].mxu0 %v387
        %v688 = vpop.f32.mrb[0].mxu0
        %v689 = vadd.f32 %v564, %v688
        %v690 = vpop.f32.mrb[0].mxu0
        %v691 = vpop.f32.mrb[0].mxu0
        %v692 = vadd.f32 %v564, %v691
        %v693 = vpop.f32.mrb[0].mxu0
        %694 = vmatprep.mubr.bf16.mxu0 0
        %695 = vmatmul.mubr.bf16.gmra.mrb[0].mxu0 %v388
        %v696 = vpop.f32.mrb[0].mxu0
        %v697 = vadd.f32 %v564, %v696
        %v698 = vpop.f32.mrb[0].mxu0
        %v699 = vpop.f32.mrb[0].mxu0
        %v700 = vadd.f32 %v564, %v699
        %v701 = vpop.f32.mrb[0].mxu0
        %702 = vmatprep.mubr.bf16.mxu0 0
        %703 = vmatmul.mubr.bf16.gmra.mrb[0].mxu0 %v389
        %v704 = vpop.f32.mrb[0].mxu0
        %v705 = vadd.f32 %v564, %v704
        %v706 = vpop.f32.mrb[0].mxu0
        %v707 = vpop.f32.mrb[0].mxu0
        %v708 = vadd.f32 %v564, %v707
        %v709 = vpop.f32.mrb[0].mxu0
        %710 = vdwg.mxu0
        %v711 = vpack.c.bf16 %v652, %v649
        %v712 = vpack.c.bf16 %v660, %v657
        %v713 = vpack.c.bf16 %v668, %v665
        %v714 = vpack.c.bf16 %v676, %v673
        %v715 = vpack.c.bf16 %v684, %v681
        %v716 = vpack.c.bf16 %v692, %v689
        %v717 = vpack.c.bf16 %v700, %v697
        %v718 = vpack.c.bf16 %v708, %v705
        %v727 = vunpack.c.l.b16 %v711
        %v728 = vunpack.c.h.b16 %v711
        %v729 = vunpack.c.l.b16 %v712
        %v730 = vunpack.c.h.b16 %v712
        %v731 = vunpack.c.l.b16 %v713
        %v732 = vunpack.c.h.b16 %v713
        %v733 = vunpack.c.l.b16 %v714
        %v734 = vunpack.c.h.b16 %v714
        %v735 = vunpack.c.l.b16 %v715
        %v736 = vunpack.c.h.b16 %v715
        %v737 = vunpack.c.l.b16 %v716
        %v738 = vunpack.c.h.b16 %v716
        %v739 = vunpack.c.l.b16 %v717
        %v740 = vunpack.c.h.b16 %v717
        %v741 = vunpack.c.l.b16 %v718
        %v742 = vunpack.c.h.b16 %v718
        %v743 = vpack.c.b16 %v727, %v727
        %v744 = vpack.c.b16 %v728, %v728
        %v745 = vpack.c.b16 %v729, %v729
        %v746 = vpack.c.b16 %v730, %v730
        %v747 = vpack.c.b16 %v731, %v731
        %v748 = vpack.c.b16 %v732, %v732
        %v749 = vpack.c.b16 %v733, %v733
        %v750 = vpack.c.b16 %v734, %v734
        %v751 = vpack.c.b16 %v735, %v735
        %v752 = vpack.c.b16 %v736, %v736
        %v753 = vpack.c.b16 %v737, %v737
        %v754 = vpack.c.b16 %v738, %v738
        %v755 = vpack.c.b16 %v739, %v739
        %v756 = vpack.c.b16 %v740, %v740
        %v757 = vpack.c.b16 %v741, %v741
        %v758 = vpack.c.b16 %v742, %v742
        %775 = vst [vmem:[%s309] sm:$0xf] %v743
        %776 = vst [vmem:[%s309 + $0x4] sm:$0xf] %v744
        %777 = vst [vmem:[%s309 + $0x8] sm:$0xf] %v745
        %778 = vst [vmem:[%s309 + $0xc] sm:$0xf] %v746
        %779 = vst [vmem:[%s309 + $0x10] sm:$0xf] %v747
        %780 = vst [vmem:[%s309 + $0x14] sm:$0xf] %v748
        %781 = vst [vmem:[%s309 + $0x18] sm:$0xf] %v749
        %782 = vst [vmem:[%s309 + $0x1c] sm:$0xf] %v750
        %783 = vst [vmem:[%s309 + $0x20] sm:$0xf] %v751
        %784 = vst [vmem:[%s309 + $0x24] sm:$0xf] %v752
        %785 = vst [vmem:[%s309 + $0x28] sm:$0xf] %v753
        %786 = vst [vmem:[%s309 + $0x2c] sm:$0xf] %v754
        %787 = vst [vmem:[%s309 + $0x30] sm:$0xf] %v755
        %788 = vst [vmem:[%s309 + $0x34] sm:$0xf] %v756
        %789 = vst [vmem:[%s309 + $0x38] sm:$0xf] %v757
        %790 = vst [vmem:[%s309 + $0x3c] sm:$0xf] %v758
        %v791 = vpack.c.bf16 %v484, %v481
        %v792 = vpack.c.bf16 %v492, %v489
        %v793 = vpack.c.bf16 %v500, %v497
        %v794 = vpack.c.bf16 %v508, %v505
        %v795 = vpack.c.bf16 %v516, %v513
        %v796 = vpack.c.bf16 %v524, %v521
        %v797 = vpack.c.bf16 %v532, %v529
        %v798 = vpack.c.bf16 %v540, %v537
        %799 = vxpose.xlu0.c.b16.start [1/8] %v791, 128
        %800 = vxpose.xlu0.c.b16.cont [2/8] %v792, 128
        %801 = vxpose.xlu0.c.b16.cont [3/8] %v793, 128
        %802 = vxpose.xlu0.c.b16.cont [4/8] %v794, 128
        %803 = vxpose.xlu0.c.b16.cont [5/8] %v795, 128
        %804 = vxpose.xlu0.c.b16.cont [6/8] %v796, 128
        %805 = vxpose.xlu0.c.b16.cont [7/8] %v797, 128
        %806 = vxpose.xlu0.c.b16.end [8/8] %v798, 128
        %v807 = vpop.trf.xlu0
        %v808 = vpop.trf.xlu0
        %v809 = vpop.trf.xlu0
        %v810 = vpop.trf.xlu0
        %v811 = vpop.trf.xlu0
        %v812 = vpop.trf.xlu0
        %v813 = vpop.trf.xlu0
        %v814 = vpop.trf.xlu0
        %v817 = vunpack.c.l.b16 %v807
        %v818 = vunpack.c.h.b16 %v807
        %v819 = vunpack.c.l.b16 %v808
        %v820 = vunpack.c.h.b16 %v808
        %v821 = vpack.c.b16 %v817, %v817
        %v822 = vpack.c.b16 %v818, %v818
        %v823 = vpack.c.b16 %v819, %v819
        %v824 = vpack.c.b16 %v820, %v820
        %829 = vst [vmem:[%s302] sm:$0xf] %v821
        %830 = vst [vmem:[%s302 + $0x4] sm:$0xf] %v822
        %831 = vst [vmem:[%s302 + $0x8] sm:$0xf] %v823
        %832 = vst [vmem:[%s302 + $0xc] sm:$0xf] %v824
        %841 = vrot.lane.b32.xlu0 %v791, 96
        %v842 = vpop.permute.xlu0 %841
        %843 = vrot.lane.b32.xlu0 %v792, 96
        %v844 = vpop.permute.xlu0 %843
        %845 = vrot.lane.b32.xlu0 %v793, 96
        %v846 = vpop.permute.xlu0 %845
        %847 = vrot.lane.b32.xlu0 %v794, 96
        %v848 = vpop.permute.xlu0 %847
        %849 = vrot.lane.b32.xlu0 %v795, 96
        %v850 = vpop.permute.xlu0 %849
        %851 = vrot.lane.b32.xlu0 %v796, 96
        %v852 = vpop.permute.xlu0 %851
        %853 = vrot.lane.b32.xlu0 %v797, 96
        %v854 = vpop.permute.xlu0 %853
        %855 = vrot.lane.b32.xlu0 %v798, 96
        %v856 = vpop.permute.xlu0 %855
        %865 = vxpose.xlu0.c.b16.start [1/8] %v842, 128
        %866 = vxpose.xlu0.c.b16.cont [2/8] %v844, 128
        %867 = vxpose.xlu0.c.b16.cont [3/8] %v846, 128
        %868 = vxpose.xlu0.c.b16.cont [4/8] %v848, 128
        %869 = vxpose.xlu0.c.b16.cont [5/8] %v850, 128
        %870 = vxpose.xlu0.c.b16.cont [6/8] %v852, 128
        %871 = vxpose.xlu0.c.b16.cont [7/8] %v854, 128
        %872 = vxpose.xlu0.c.b16.end [8/8] %v856, 128
        %v873 = vpop.trf.xlu0
        %v874 = vpop.trf.xlu0
        %v875 = vpop.trf.xlu0
        %v876 = vpop.trf.xlu0
        %v877 = vpop.trf.xlu0
        %v878 = vpop.trf.xlu0
        %v879 = vpop.trf.xlu0
        %v880 = vpop.trf.xlu0
        %v883 = vunpack.c.l.b16 %v873
        %v884 = vunpack.c.h.b16 %v873
        %v885 = vunpack.c.l.b16 %v874
        %v886 = vunpack.c.h.b16 %v874
        %v887 = vpack.c.b16 %v883, %v883
        %v888 = vpack.c.b16 %v884, %v884
        %v889 = vpack.c.b16 %v885, %v885
        %v890 = vpack.c.b16 %v886, %v886
        %s895 = scalar_lea.vmem %s302, 16 [#allocation8]
        %896 = vst [vmem:[%s895] sm:$0xf] %v887
        %897 = vst [vmem:[%s895 + $0x4] sm:$0xf] %v888
        %898 = vst [vmem:[%s895 + $0x8] sm:$0xf] %v889
        %899 = vst [vmem:[%s895 + $0xc] sm:$0xf] %v890
        %900 = vrot.lane.b32.xlu0 %v791, 64
        %v901 = vpop.permute.xlu0 %900
        %902 = vrot.lane.b32.xlu0 %v792, 64
        %v903 = vpop.permute.xlu0 %902
        %904 = vrot.lane.b32.xlu0 %v793, 64
        %v905 = vpop.permute.xlu0 %904
        %906 = vrot.lane.b32.xlu0 %v794, 64
        %v907 = vpop.permute.xlu0 %906
        %908 = vrot.lane.b32.xlu0 %v795, 64
        %v909 = vpop.permute.xlu0 %908
        %910 = vrot.lane.b32.xlu0 %v796, 64
        %v911 = vpop.permute.xlu0 %910
        %912 = vrot.lane.b32.xlu0 %v797, 64
        %v913 = vpop.permute.xlu0 %912
        %914 = vrot.lane.b32.xlu0 %v798, 64
        %v915 = vpop.permute.xlu0 %914
        %924 = vxpose.xlu0.c.b16.start [1/8] %v901, 128
        %925 = vxpose.xlu0.c.b16.cont [2/8] %v903, 128
        %926 = vxpose.xlu0.c.b16.cont [3/8] %v905, 128
        %927 = vxpose.xlu0.c.b16.cont [4/8] %v907, 128
        %928 = vxpose.xlu0.c.b16.cont [5/8] %v909, 128
        %929 = vxpose.xlu0.c.b16.cont [6/8] %v911, 128
        %930 = vxpose.xlu0.c.b16.cont [7/8] %v913, 128
        %931 = vxpose.xlu0.c.b16.end [8/8] %v915, 128
        %v932 = vpop.trf.xlu0
        %v933 = vpop.trf.xlu0
        %v934 = vpop.trf.xlu0
        %v935 = vpop.trf.xlu0
        %v936 = vpop.trf.xlu0
        %v937 = vpop.trf.xlu0
        %v938 = vpop.trf.xlu0
        %v939 = vpop.trf.xlu0
        %v942 = vunpack.c.l.b16 %v932
        %v943 = vunpack.c.h.b16 %v932
        %v944 = vunpack.c.l.b16 %v933
        %v945 = vunpack.c.h.b16 %v933
        %v946 = vpack.c.b16 %v942, %v942
        %v947 = vpack.c.b16 %v943, %v943
        %v948 = vpack.c.b16 %v944, %v944
        %v949 = vpack.c.b16 %v945, %v945
        %s954 = scalar_lea.vmem %s302, 32 [#allocation8]
        %955 = vst [vmem:[%s954] sm:$0xf] %v946
        %956 = vst [vmem:[%s954 + $0x4] sm:$0xf] %v947
        %957 = vst [vmem:[%s954 + $0x8] sm:$0xf] %v948
        %958 = vst [vmem:[%s954 + $0xc] sm:$0xf] %v949
        %959 = vrot.lane.b32.xlu0 %v791, 32
        %v960 = vpop.permute.xlu0 %959
        %961 = vrot.lane.b32.xlu0 %v792, 32
        %v962 = vpop.permute.xlu0 %961
        %963 = vrot.lane.b32.xlu0 %v793, 32
        %v964 = vpop.permute.xlu0 %963
        %965 = vrot.lane.b32.xlu0 %v794, 32
        %v966 = vpop.permute.xlu0 %965
        %967 = vrot.lane.b32.xlu0 %v795, 32
        %v968 = vpop.permute.xlu0 %967
        %969 = vrot.lane.b32.xlu0 %v796, 32
        %v970 = vpop.permute.xlu0 %969
        %971 = vrot.lane.b32.xlu0 %v797, 32
        %v972 = vpop.permute.xlu0 %971
        %973 = vrot.lane.b32.xlu0 %v798, 32
        %v974 = vpop.permute.xlu0 %973
        %983 = vxpose.xlu0.c.b16.start [1/8] %v960, 128
        %984 = vxpose.xlu0.c.b16.cont [2/8] %v962, 128
        %985 = vxpose.xlu0.c.b16.cont [3/8] %v964, 128
        %986 = vxpose.xlu0.c.b16.cont [4/8] %v966, 128
        %987 = vxpose.xlu0.c.b16.cont [5/8] %v968, 128
        %988 = vxpose.xlu0.c.b16.cont [6/8] %v970, 128
        %989 = vxpose.xlu0.c.b16.cont [7/8] %v972, 128
        %990 = vxpose.xlu0.c.b16.end [8/8] %v974, 128
        %v991 = vpop.trf.xlu0
        %v992 = vpop.trf.xlu0
        %v993 = vpop.trf.xlu0
        %v994 = vpop.trf.xlu0
        %v995 = vpop.trf.xlu0
        %v996 = vpop.trf.xlu0
        %v997 = vpop.trf.xlu0
        %v998 = vpop.trf.xlu0
        %v1001 = vunpack.c.l.b16 %v991
        %v1002 = vunpack.c.h.b16 %v991
        %v1003 = vunpack.c.l.b16 %v992
        %v1004 = vunpack.c.h.b16 %v992
        %v1005 = vpack.c.b16 %v1001, %v1001
        %v1006 = vpack.c.b16 %v1002, %v1002
        %v1007 = vpack.c.b16 %v1003, %v1003
        %v1008 = vpack.c.b16 %v1004, %v1004
        %s1013 = scalar_lea.vmem %s302, 48 [#allocation8]
        %1014 = vst [vmem:[%s1013] sm:$0xf] %v1005
        %1015 = vst [vmem:[%s1013 + $0x4] sm:$0xf] %v1006
        %1016 = vst [vmem:[%s1013 + $0x8] sm:$0xf] %v1007
        %1017 = vst [vmem:[%s1013 + $0xc] sm:$0xf] %v1008
        %s1018 = sand.u32 %s146, 1
        %s1019 = scalar_lea.sflag [#allocation4], %s1018
        %s1020 = sand.u32 %s146, 1
        %s1021 = smul.addr %s1020, 64
        %s1022 = scalar_lea.vmem [#allocation8], %s1021
        %s1023 = sand.u32 %s172, 1
        %s1024 = scalar_lea.sflag [#allocation10], %s1023
        %s1025 = sand.u32 %s172, 1
        %s1026 = smul.addr %s1025, 64
        %s1027 = scalar_lea.vmem [#allocation9], %s1026
        // Predicated region
        $region53: #{tpu_custom_call.1} parent=39 // pred_check
          %p1028 = pneg %p156
        $region54: #{tpu_custom_call.1} parent=39 // pred_check_branch
          %1030 = sbr.rel (%p1028) target = $region56
        $region55: #{tpu_custom_call.1} parent=39 // pred_region
          %s1032 = ssub.s32 1024, 1024
          %1033 = vsyncadd %s1019, %s1032
          %s1034 = smul.addr %s28, 16
          %s1035 = smul.addr %s1034, 64
          %s1036 = scalar_lea.hbm %s5, %s1035
          %s1037 = sshll.u32 %s1022, 4
          %s1038 = int_to_ptr.vmem [resolvable:$true] %s1037
          %1043 = dma.vmem_to_hbm [thread:$0]  %s1038, 1024, %s1036, %s1019, 64, 64, 4
        $region56: #{tpu_custom_call.1} parent=39 // pred_fallthru
          _
        // Predicated region
        $region57: #{tpu_custom_call.1} parent=39 // pred_check
          %p1044 = pneg %p182
        $region58: #{tpu_custom_call.1} parent=39 // pred_check_branch
          %1046 = sbr.rel (%p1044) target = $region60
        $region59: #{tpu_custom_call.1} parent=39 // pred_region
          %s1048 = ssub.s32 1024, 1024
          %1049 = vsyncadd %s1024, %s1048
          %s1050 = smul.addr %s28, 16
          %s1051 = smul.addr %s1050, 64
          %s1052 = scalar_lea.hbm %s6, %s1051
          %s1053 = sshll.u32 %s1027, 4
          %s1054 = int_to_ptr.vmem [resolvable:$true] %s1053
          %1059 = dma.vmem_to_hbm [thread:$0]  %s1054, 1024, %s1052, %s1024, 64, 64, 4
        $region60: #{tpu_custom_call.1} parent=39 // pred_fallthru
          _
      $region40: #{tpu_custom_call.1} parent=5 // pred_fallthru
        _
      %p1060 = scmp.le.s32.totalorder 2, %s23
      // Predicated region
      $region61: #{tpu_custom_call.1} parent=5 // pred_check
        %p1061 = pneg %p1060
      $region62: #{tpu_custom_call.1} parent=5 // pred_check_branch
        %1063 = sbr.rel (%p1061) target = $region64
      $region63: #{tpu_custom_call.1} parent=5 // pred_region
        %s1064 = ssub.s32 %s23, 2
        // Predicated region
        $region65: #{tpu_custom_call.1} parent=63 // pred_check
          %p1065 = pneg %p162
        $region66: #{tpu_custom_call.1} parent=63 // pred_check_branch
          %1067 = sbr.rel (%p1065) target = $region68
        $region67: #{tpu_custom_call.1} parent=63 // pred_region
          %s1068 = sand.u32 %s147, 1
          %s1069 = scalar_lea.sflag [#allocation4], %s1068
          %s1070 = sand.u32 %s147, 1
          %s1071 = smul.addr %s1070, 64
          %s1072 = scalar_lea.vmem [#allocation8], %s1071
          %1073 = dma.done %s1069, 1024
        $region68: #{tpu_custom_call.1} parent=63 // pred_fallthru
          _
        // Predicated region
        $region69: #{tpu_custom_call.1} parent=63 // pred_check
          %p1074 = pneg %p188
        $region70: #{tpu_custom_call.1} parent=63 // pred_check_branch
          %1076 = sbr.rel (%p1074) target = $region72
        $region71: #{tpu_custom_call.1} parent=63 // pred_region
          %s1077 = sand.u32 %s173, 1
          %s1078 = scalar_lea.sflag [#allocation10], %s1077
          %s1079 = sand.u32 %s173, 1
          %s1080 = smul.addr %s1079, 64
          %s1081 = scalar_lea.vmem [#allocation9], %s1080
          %1082 = dma.done %s1078, 1024
        $region72: #{tpu_custom_call.1} parent=63 // pred_fallthru
          _
      $region64: #{tpu_custom_call.1} parent=5 // pred_fallthru
        _
    $region6: #{tpu_custom_call.1} parent=1 // loop_footer
      %s27 = sadd.s32 1, %s23
    $region7: #{tpu_custom_call.1} parent=1 // loop_footer_branch
      %22 = sbr.rel target = $region3
    $region8: #{tpu_custom_call.1} parent=1 // loop_exit
      _
    %1083 = vsyncpa [#allocation3], 1
    %s1084 = scalar_lea.sflag [#allocation3], 1
    %1085 = vsyncpa %s1084, 1
    %1086 = vsyncpa [#allocation6], 1
    %1087 = vsyncpa [#allocation4], 1
    %s1088 = scalar_lea.sflag [#allocation4], 1
    %1089 = vsyncpa %s1088, 1
    %1090 = vsyncpa [#allocation10], 1
    %s1091 = scalar_lea.sflag [#allocation10], 1
    %1092 = vsyncpa %s1091, 1

</llo_original>
